<compile_context>
chip_gen: v7x
topology: tpu7x:2x2x1
jax: 0.10.0
libtpu: 0.0.40
codegen_flags: <defaults>
</compile_context>

<pallas_src>
import jax
import jax.numpy as jnp
from jax.experimental import pallas as pl
from jax.experimental.pallas import tpu as pltpu


# ----------------------------------------------------------------------------
# Kernel 1: support-side precompute (batch independent, runs exactly once).
#   h_v = ReLU(sv @ Ww + bw)            [V, K]
#   M   = h_v @ A                       [V, L]   (bilinear weight folded in)
#   wb  = h_v @ w_l                     [V, 1]   (w_linear(h_v), no bias)
# ----------------------------------------------------------------------------
def support_precompute_kernel(sv_ref, ww_ref, bw_ref, a_ref, wl_ref,
                              m_ref, wb_ref):
    hv = jnp.dot(sv_ref[...], ww_ref[...], preferred_element_type=jnp.float32)
    hv = jnp.maximum(hv + bw_ref[...], 0.0)                       # [V, K]
    m_ref[...] = jnp.dot(hv, a_ref[...], preferred_element_type=jnp.float32)
    wb_ref[...] = jnp.dot(hv, wl_ref[...], preferred_element_type=jnp.float32)


# ----------------------------------------------------------------------------
# Kernel 2: batched energy + logsumexp + target pick, TRANSPOSED layout
# (batch on lanes) so targets / output are lane-dense rows.
# ----------------------------------------------------------------------------
def bilinear_nll_kernel(vcT_ref, wcT_ref, bc_ref, m_ref, wb_ref,
                        tgt_ref, out_ref):
    # c_encoder, transposed:  h_c^T = ReLU(Wc^T @ v_c^T + b_c)        [L, tb]
    h_cT = jnp.dot(wcT_ref[...], vcT_ref[...], preferred_element_type=jnp.float32)
    h_cT = jnp.maximum(h_cT + bc_ref[...], 0.0)

    # energy^T[v, b] = (h_v A)[v] @ h_c[b] + (h_v @ w_l)[v]
    energyT = jnp.dot(m_ref[...], h_cT, preferred_element_type=jnp.float32)  # [V, tb]
    energyT = energyT + wb_ref[...]

    # logZ = logsumexp over the support axis (sublane axis 0) -> lane-dense [1, tb]
    m = jnp.max(energyT, axis=0, keepdims=True)
    lse = jnp.log(jnp.sum(jnp.exp(energyT - m), axis=0, keepdims=True))

    # Target-row energy picked directly from the raw energies
    # (== energy.T[w_support_indices].diag()); no log-prob tensor materialized.
    rows = jax.lax.broadcasted_iota(jnp.int32, energyT.shape, 0)             # [V, tb]
    picked = jnp.sum(jnp.where(rows == tgt_ref[...], energyT, 0.0),
                     axis=0, keepdims=True)                                  # [1, tb]

    # result = logZ - w_energy
    out_ref[...] = (m + lse) - picked


# ----------------------------------------------------------------------------
# Wrapper
# ----------------------------------------------------------------------------
def conditional_log_bilinear_nll(v_c, support_vectors, wc, bc, ww, bw, A, wl,
                                 tgt, *, tb=None):
    """NLL of ConditionalLogBilinear.forward_from_indices.

    v_c:             [B, D]  context embeddings (vectors[cs])
    support_vectors: [V, D]  vectors[support_to_vector]
    wc, bc:          c_encoder Linear (D->L) weight / bias
    ww, bw:          w_encoder Linear (D->K) weight / bias
    A:               [K, L]  bilinear weight (squeezed)
    wl:              [K, 1]  w_linear weight (transposed, no bias)
    tgt:             [B]     target support indices (vector_to_support[ws])
    """
    B, D = v_c.shape
    L = wc.shape[1]
    K = ww.shape[1]
    V = support_vectors.shape[0]

    # ---- support side: computed once, batch independent ----
    M, wb = pl.pallas_call(
        support_precompute_kernel,
        out_shape=(jax.ShapeDtypeStruct((V, L), jnp.float32),
                   jax.ShapeDtypeStruct((V, 1), jnp.float32)),
        cost_estimate=pl.CostEstimate(
            flops=int(2 * V * (D * K + K * L + K)),
            transcendentals=0,
            bytes_accessed=int(4 * (V * D + D * K + K + K * L + K
                                    + V * L + V))),
    )(support_vectors, ww, bw.reshape(1, K), A, wl)

    # ---- batched part: batch on lanes, tb-wide lane tiles ----
    if tb is None:
        tb = 128 if B % 128 == 0 else B
    assert B % tb == 0, (B, tb)

    vcT = v_c.T                                   # [D, B]  (layout plumbing, once)
    wcT = wc.T                                    # [L, D]
    bcc = bc.reshape(L, 1)                        # [L, 1]
    tgt_row = tgt.reshape(1, B).astype(jnp.int32) # [1, B]  lane-dense targets

    flops = 2 * B * (D * L + V * L)
    transcendentals = B * V + B
    bytes_accessed = 4 * (B * D + L * D + L + V * L + V + 2 * B)

    nll_row = pl.pallas_call(
        bilinear_nll_kernel,
        out_shape=jax.ShapeDtypeStruct((1, B), jnp.float32),
        grid=(B // tb,),
        in_specs=[
            pl.BlockSpec((D, tb), lambda i: (0, i)),   # v_c^T tile (batch on lanes)
            pl.BlockSpec((L, D), lambda i: (0, 0)),    # Wc^T
            pl.BlockSpec((L, 1), lambda i: (0, 0)),    # b_c column
            pl.BlockSpec((V, L), lambda i: (0, 0)),    # M = h_v @ A
            pl.BlockSpec((V, 1), lambda i: (0, 0)),    # w_linear(h_v) column
            pl.BlockSpec((1, tb), lambda i: (0, i)),   # target support indices
        ],
        out_specs=pl.BlockSpec((1, tb), lambda i: (0, i)),
        compiler_params=pltpu.CompilerParams(
            dimension_semantics=("parallel",)),
        cost_estimate=pl.CostEstimate(flops=int(flops),
                                      transcendentals=int(transcendentals),
                                      bytes_accessed=int(bytes_accessed)),
    )(vcT, wcT, bcc, M, wb, tgt_row)

    return nll_row.reshape(B)


if __name__ == "__main__":
    key = jax.random.PRNGKey(0)
    ks = jax.random.split(key, 11)

    # Small, lane-width-friendly model config (dims multiples of 128).
    N_vocab = 512   # len(vectors.word_indices)
    D = 128         # vectors.D
    L = 128         # c_encoder_structure = [D, L]
    K = 128         # w_encoder_structure = [D, K]
    V = 256         # len(support)
    B = 256         # batch; tb=128 -> grid=(2,) parallel tiles

    vectors = jax.random.normal(ks[0], (N_vocab, D), jnp.float32)
    wc = jax.random.normal(ks[1], (D, L), jnp.float32) * (1.0 / jnp.sqrt(D))
    bc = jax.random.normal(ks[2], (L,), jnp.float32) * 0.1
    ww = jax.random.normal(ks[3], (D, K), jnp.float32) * (1.0 / jnp.sqrt(D))
    bw = jax.random.normal(ks[4], (K,), jnp.float32) * 0.1
    A = jax.random.normal(ks[5], (K, L), jnp.float32) * (1.0 / jnp.sqrt(K))
    wl = jax.random.normal(ks[6], (K, 1), jnp.float32) * (1.0 / jnp.sqrt(K))

    # support_to_vector: which vocab rows are in the support;
    # vector_to_support: vocab index -> support index (UNK collapse modeled as random map).
    support_to_vector = jax.random.permutation(ks[7], N_vocab)[:V]
    vector_to_support = jax.random.randint(ks[8], (N_vocab,), 0, V, dtype=jnp.int32)

    # Batch of (word index, context index) pairs.
    ws = jax.random.randint(ks[9], (B,), 0, N_vocab, dtype=jnp.int32)
    cs = jax.random.randint(ks[10], (B,), 0, N_vocab, dtype=jnp.int32)

    # Glue (plain JAX): embedding gathers + word -> support index mapping.
    v_c = vectors[cs]                                   # [B, D]
    support_vectors = vectors[support_to_vector]        # [V, D]
    tgt = vector_to_support[ws]                         # [B]

    # Pallas kernels.
    nll = conditional_log_bilinear_nll(v_c, support_vectors, wc, bc, ww, bw, A, wl, tgt)
    nll = jax.block_until_ready(nll)                    # [B]

    # Pure-JAX reference (high-precision matmuls).
    HI = jax.lax.Precision.HIGHEST
    h_c_ref = jax.nn.relu(jnp.dot(v_c, wc, precision=HI) + bc)
    h_v_ref = jax.nn.relu(jnp.dot(support_vectors, ww, precision=HI) + bw)
    energy_ref = (jnp.einsum('vi,ij,bj->bv', h_v_ref, A, h_c_ref, precision=HI)
                  + jnp.dot(h_v_ref, wl, precision=HI).T)
    w_energy_ref = energy_ref[jnp.arange(B), tgt]
    logZ_ref = jax.scipy.special.logsumexp(energy_ref, axis=-1)
    nll_ref = logZ_ref - w_energy_ref

    assert nll.shape == (B,)
    assert jnp.allclose(nll, nll_ref, atol=1e-3, rtol=1e-3), (
        float(jnp.max(jnp.abs(nll - nll_ref))))
    print("KERNEL_OK")
</pallas_src>

<mosaic_0001>
module attributes {stable_mosaic.version = 11 : i64} {
  func.func @support_precompute_kernel(%arg0: memref<256x128xf32, #tpu.memory_space<vmem>>, %arg1: memref<128x128xf32, #tpu.memory_space<vmem>>, %arg2: memref<1x128xf32, #tpu.memory_space<vmem>>, %arg3: memref<128x128xf32, #tpu.memory_space<vmem>>, %arg4: memref<128x1xf32, #tpu.memory_space<vmem>>, %arg5: memref<256x128xf32, #tpu.memory_space<vmem>>, %arg6: memref<256x1xf32, #tpu.memory_space<vmem>>) attributes {dimension_semantics = [], scalar_prefetch = 0 : i64, scratch_operands = 0 : i64, tpu.core_type = #tpu.core_type<tc>} {
    %c0 = arith.constant 0 : index
    %c0_0 = arith.constant 0 : index
    %0 = vector.load %arg0[%c0, %c0_0] : memref<256x128xf32, #tpu.memory_space<vmem>>, vector<256x128xf32>
    %c0_1 = arith.constant 0 : index
    %c0_2 = arith.constant 0 : index
    %1 = vector.load %arg1[%c0_1, %c0_2] : memref<128x128xf32, #tpu.memory_space<vmem>>, vector<128x128xf32>
    %cst = arith.constant dense<0.000000e+00> : vector<256x128xf32>
    %2 = tpu.matmul %0, %1, %cst {dimension_numbers = #tpu.dot_dimension_numbers<[1], [0], [0], [1], [0, 0, 1, 1], [], []>} : vector<256x128xf32>, vector<128x128xf32>, vector<256x128xf32> -> vector<256x128xf32>
    %c0_3 = arith.constant 0 : index
    %c0_4 = arith.constant 0 : index
    %3 = vector.load %arg2[%c0_3, %c0_4] : memref<1x128xf32, #tpu.memory_space<vmem>>, vector<1x128xf32>
    %4 = vector.broadcast %3 : vector<1x128xf32> to vector<256x128xf32>
    %5 = arith.addf %2, %4 : vector<256x128xf32>
    %cst_5 = arith.constant 0.000000e+00 : f32
    %6 = vector.broadcast %cst_5 : f32 to vector<256x128xf32>
    %7 = arith.maximumf %5, %6 : vector<256x128xf32>
    %c0_6 = arith.constant 0 : index
    %c0_7 = arith.constant 0 : index
    %8 = vector.load %arg3[%c0_6, %c0_7] : memref<128x128xf32, #tpu.memory_space<vmem>>, vector<128x128xf32>
    %cst_8 = arith.constant dense<0.000000e+00> : vector<256x128xf32>
    %9 = tpu.matmul %7, %8, %cst_8 {dimension_numbers = #tpu.dot_dimension_numbers<[1], [0], [0], [1], [0, 0, 1, 1], [], []>} : vector<256x128xf32>, vector<128x128xf32>, vector<256x128xf32> -> vector<256x128xf32>
    %c0_9 = arith.constant 0 : index
    %c0_10 = arith.constant 0 : index
    %10 = vector.load %arg5[%c0_9, %c0_10] : memref<256x128xf32, #tpu.memory_space<vmem>>, vector<256x128xf32>
    tpu.vector_store %arg5[%c0_9, %c0_10], %9 {strides = array<i32>} : memref<256x128xf32, #tpu.memory_space<vmem>>, vector<256x128xf32>,
    %c0_11 = arith.constant 0 : index
    %c0_12 = arith.constant 0 : index
    %11 = vector.load %arg4[%c0_11, %c0_12] : memref<128x1xf32, #tpu.memory_space<vmem>>, vector<128x1xf32>
    %cst_13 = arith.constant dense<0.000000e+00> : vector<256x1xf32>
    %12 = tpu.matmul %7, %11, %cst_13 {dimension_numbers = #tpu.dot_dimension_numbers<[1], [0], [0], [1], [0, 0, 1, 1], [], []>} : vector<256x128xf32>, vector<128x1xf32>, vector<256x1xf32> -> vector<256x1xf32>
    %c0_14 = arith.constant 0 : index
    %c0_15 = arith.constant 0 : index
    %13 = vector.load %arg6[%c0_14, %c0_15] : memref<256x1xf32, #tpu.memory_space<vmem>>, vector<256x1xf32>
    tpu.vector_store %arg6[%c0_14, %c0_15], %12 {strides = array<i32>} : memref<256x1xf32, #tpu.memory_space<vmem>>, vector<256x1xf32>,
    return
  }
}

</mosaic_0001>

<llo_original>
// kernel: tpu_custom_call.1
$region0: #{tpu_custom_call.1}
  #allocation0 [shape = 'u32[]', space=smem, size = 0x4, offset = 0x4, fixed_abs, tag = 'smem constant byte address 0x4 - core index']
  #allocation1 [shape = 'u32[144,128]{1,0:T(1,128)}', space=vmem, size = 0x12000, scoped, tag = 'internal scratch']
  %s0 = inlined_call_operand.hbm [shape: f32[256,128], index: 0, kind: input, shape index: {}]
  %s1 = inlined_call_operand.vmem [shape: f32[128,128], index: 1, kind: input, shape index: {}]
  %s2 = inlined_call_operand.vmem [shape: f32[1,128], index: 2, kind: input, shape index: {}]
  %s3 = inlined_call_operand.hbm [shape: f32[128,128], index: 3, kind: input, shape index: {}]
  %s4 = inlined_call_operand.vmem [shape: f32[128,1], index: 4, kind: input, shape index: {}]
  %s5 = inlined_call_operand.hbm [shape: f32[256,128], index: 5, kind: output, shape index: {0}]
  %s6 = inlined_call_operand.vmem [shape: f32[256,1], index: 6, kind: output, shape index: {1}]
  %7 = xla_tuple %s5, %s6
  %s8 = sld [smem:[#allocation0]]
  $region46: #{tpu_custom_call.1} parent=0
    _
  %s10 = ssub.s32 1, %s8
  %s11 = scalar_select 0, %s10, %s8
  $region1: #{tpu_custom_call.1} parent=0
    #allocation2 [shape = 'u8[131072]{0}', space=vmem, size = 0x20000, scoped, tag = 'input window, operand 0, single buffered']
    #allocation3 [shape = 's32[1]{0}', space=sflag, size = 0x4, scoped, tag = 'scoped memory for tpu_custom_call.1']
    #allocation4 [shape = 's32[1]{0}', space=sflag, size = 0x4, scoped, tag = 'scoped memory for tpu_custom_call.1']
    #allocation5 [shape = 'u8[65536]{0}', space=vmem, size = 0x10000, scoped, tag = 'input window, operand 3, single buffered']
    #allocation6 [shape = 's32[1]{0}', space=sflag, size = 0x4, scoped, tag = 'scoped memory for tpu_custom_call.1']
    #allocation7 [shape = 'u8[131072]{0}', space=vmem, size = 0x20000, scoped, tag = 'output window, operand 0, single buffered']
    %12 = vsyncpa [#allocation3], 0
    %13 = vsyncpa [#allocation6], 0
    %14 = vsyncpa [#allocation4], 0
    // Predicated region
    $region2: #{tpu_custom_call.1} parent=1 // pred_check
      _
    $region3: #{tpu_custom_call.1} parent=1 // pred_check_branch
      %16 = sbr.rel (0) target = $region5
    $region4: #{tpu_custom_call.1} parent=1 // pred_region
      %s18 = ssub.s32 4096, 4096
      %19 = vsyncadd [#allocation3], %s18
      %s20 = sshll.u32 [#allocation2], 4
      %s21 = int_to_ptr.vmem [resolvable:$true] %s20
      %26 = dma.hbm_to_vmem [thread:$0]  %s0, 4096, %s21, [#allocation3], 128, 128, 8
    $region5: #{tpu_custom_call.1} parent=1 // pred_fallthru
      _
    // Predicated region
    $region6: #{tpu_custom_call.1} parent=1 // pred_check
      _
    $region7: #{tpu_custom_call.1} parent=1 // pred_check_branch
      %28 = sbr.rel (0) target = $region9
    $region8: #{tpu_custom_call.1} parent=1 // pred_region
      _
    $region9: #{tpu_custom_call.1} parent=1 // pred_fallthru
      _
    // Predicated region
    $region10: #{tpu_custom_call.1} parent=1 // pred_check
      _
    $region11: #{tpu_custom_call.1} parent=1 // pred_check_branch
      %30 = sbr.rel (0) target = $region13
    $region12: #{tpu_custom_call.1} parent=1 // pred_region
      _
    $region13: #{tpu_custom_call.1} parent=1 // pred_fallthru
      _
    // Predicated region
    $region14: #{tpu_custom_call.1} parent=1 // pred_check
      _
    $region15: #{tpu_custom_call.1} parent=1 // pred_check_branch
      %32 = sbr.rel (0) target = $region17
    $region16: #{tpu_custom_call.1} parent=1 // pred_region
      %s34 = ssub.s32 2048, 2048
      %35 = vsyncadd [#allocation6], %s34
      %s36 = sshll.u32 [#allocation5], 4
      %s37 = int_to_ptr.vmem [resolvable:$true] %s36
      %42 = dma.hbm_to_vmem [thread:$0]  %s3, 2048, %s37, [#allocation6], 128, 128, 8
    $region17: #{tpu_custom_call.1} parent=1 // pred_fallthru
      _
    // Predicated region
    $region18: #{tpu_custom_call.1} parent=1 // pred_check
      _
    $region19: #{tpu_custom_call.1} parent=1 // pred_check_branch
      %44 = sbr.rel (0) target = $region21
    $region20: #{tpu_custom_call.1} parent=1 // pred_region
      _
    $region21: #{tpu_custom_call.1} parent=1 // pred_fallthru
      _
    // Predicated region
    $region22: #{tpu_custom_call.1} parent=1 // pred_check
      _
    $region23: #{tpu_custom_call.1} parent=1 // pred_check_branch
      %46 = sbr.rel (0) target = $region25
    $region24: #{tpu_custom_call.1} parent=1 // pred_region
      %47 = dma.done [#allocation3], 4096
    $region25: #{tpu_custom_call.1} parent=1 // pred_fallthru
      _
    // Predicated region
    $region26: #{tpu_custom_call.1} parent=1 // pred_check
      _
    $region27: #{tpu_custom_call.1} parent=1 // pred_check_branch
      %49 = sbr.rel (0) target = $region29
    $region28: #{tpu_custom_call.1} parent=1 // pred_region
      %50 = dma.done [#allocation6], 2048
    $region29: #{tpu_custom_call.1} parent=1 // pred_fallthru
      _
    %v51 = vld [vmem:[#allocation2] sm:$0xff]
    %v52 = vld [vmem:[#allocation2 + $0x8] sm:$0xff]
    %v53 = vld [vmem:[#allocation2 + $0x10] sm:$0xff]
    %v54 = vld [vmem:[#allocation2 + $0x18] sm:$0xff]
    %v55 = vld [vmem:[#allocation2 + $0x20] sm:$0xff]
    %v56 = vld [vmem:[#allocation2 + $0x28] sm:$0xff]
    %v57 = vld [vmem:[#allocation2 + $0x30] sm:$0xff]
    %v58 = vld [vmem:[#allocation2 + $0x38] sm:$0xff]
    %v59 = vld [vmem:[#allocation2 + $0x40] sm:$0xff]
    %v60 = vld [vmem:[#allocation2 + $0x48] sm:$0xff]
    %v61 = vld [vmem:[#allocation2 + $0x50] sm:$0xff]
    %v62 = vld [vmem:[#allocation2 + $0x58] sm:$0xff]
    %v63 = vld [vmem:[#allocation2 + $0x60] sm:$0xff]
    %v64 = vld [vmem:[#allocation2 + $0x68] sm:$0xff]
    %v65 = vld [vmem:[#allocation2 + $0x70] sm:$0xff]
    %v66 = vld [vmem:[#allocation2 + $0x78] sm:$0xff]
    %v67 = vld [vmem:[#allocation2 + $0x80] sm:$0xff]
    %v68 = vld [vmem:[#allocation2 + $0x88] sm:$0xff]
    %v69 = vld [vmem:[#allocation2 + $0x90] sm:$0xff]
    %v70 = vld [vmem:[#allocation2 + $0x98] sm:$0xff]
    %v71 = vld [vmem:[#allocation2 + $0xa0] sm:$0xff]
    %v72 = vld [vmem:[#allocation2 + $0xa8] sm:$0xff]
    %v73 = vld [vmem:[#allocation2 + $0xb0] sm:$0xff]
    %v74 = vld [vmem:[#allocation2 + $0xb8] sm:$0xff]
    %v75 = vld [vmem:[#allocation2 + $0xc0] sm:$0xff]
    %v76 = vld [vmem:[#allocation2 + $0xc8] sm:$0xff]
    %v77 = vld [vmem:[#allocation2 + $0xd0] sm:$0xff]
    %v78 = vld [vmem:[#allocation2 + $0xd8] sm:$0xff]
    %v79 = vld [vmem:[#allocation2 + $0xe0] sm:$0xff]
    %v80 = vld [vmem:[#allocation2 + $0xe8] sm:$0xff]
    %v81 = vld [vmem:[#allocation2 + $0xf0] sm:$0xff]
    %v82 = vld [vmem:[#allocation2 + $0xf8] sm:$0xff]
    %v83 = vld [vmem:[%s1] sm:$0xff]
    %v84 = vld [vmem:[%s1 + $0x8] sm:$0xff]
    %v85 = vld [vmem:[%s1 + $0x10] sm:$0xff]
    %v86 = vld [vmem:[%s1 + $0x18] sm:$0xff]
    %v87 = vld [vmem:[%s1 + $0x20] sm:$0xff]
    %v88 = vld [vmem:[%s1 + $0x28] sm:$0xff]
    %v89 = vld [vmem:[%s1 + $0x30] sm:$0xff]
    %v90 = vld [vmem:[%s1 + $0x38] sm:$0xff]
    %v91 = vld [vmem:[%s1 + $0x40] sm:$0xff]
    %v92 = vld [vmem:[%s1 + $0x48] sm:$0xff]
    %v93 = vld [vmem:[%s1 + $0x50] sm:$0xff]
    %v94 = vld [vmem:[%s1 + $0x58] sm:$0xff]
    %v95 = vld [vmem:[%s1 + $0x60] sm:$0xff]
    %v96 = vld [vmem:[%s1 + $0x68] sm:$0xff]
    %v97 = vld [vmem:[%s1 + $0x70] sm:$0xff]
    %v98 = vld [vmem:[%s1 + $0x78] sm:$0xff]
    %v99 = vld [vmem:[%s2] sm:$0x1]
    %v101 = vlaneseq
    %v102 = vshrl.u32 %v101, 7
    %v103 = vsub.s32 0, %v102
    %v104 = vrot.slane %v99, %v103
    %106 = vmatprep.subr.mxu0 0.0
    %107 = vmatpush1.msra.mxu0 %v83
    %108 = vmatprep.subr.mxu0 0.0
    %109 = vmatpush1.msra.mxu0 %v84
    %110 = vmatprep.subr.mxu0 0.0
    %111 = vmatpush1.msra.mxu0 %v85
    %112 = vmatprep.subr.mxu0 0.0
    %113 = vmatpush1.msra.mxu0 %v86
    %114 = vmatprep.subr.mxu0 0.0
    %115 = vmatpush1.msra.mxu0 %v87
    %116 = vmatprep.subr.mxu0 0.0
    %117 = vmatpush1.msra.mxu0 %v88
    %118 = vmatprep.subr.mxu0 0.0
    %119 = vmatpush1.msra.mxu0 %v89
    %120 = vmatprep.subr.mxu0 0.0
    %121 = vmatpush1.msra.mxu0 %v90
    %122 = vmatprep.subr.mxu0 0.0
    %123 = vmatpush1.msra.mxu0 %v91
    %124 = vmatprep.subr.mxu0 0.0
    %125 = vmatpush1.msra.mxu0 %v92
    %126 = vmatprep.subr.mxu0 0.0
    %127 = vmatpush1.msra.mxu0 %v93
    %128 = vmatprep.subr.mxu0 0.0
    %129 = vmatpush1.msra.mxu0 %v94
    %130 = vmatprep.subr.mxu0 0.0
    %131 = vmatpush1.msra.mxu0 %v95
    %132 = vmatprep.subr.mxu0 0.0
    %133 = vmatpush1.msra.mxu0 %v96
    %134 = vmatprep.subr.mxu0 0.0
    %135 = vmatpush1.msra.mxu0 %v97
    %136 = vmatprep.subr.mxu0 0.0
    %137 = vmatpush1.msra.mxu0 %v98
    %138 = vmatprep.subr.mxu0 0.0
    %139 = vmatpush1.msra.mxu0 0.0
    %140 = vmatprep.subr.mxu0 0.0
    %141 = vmatpush1.msra.mxu0 0.0
    %142 = vmatprep.subr.mxu0 0.0
    %143 = vmatpush1.msra.mxu0 0.0
    %144 = vmatprep.subr.mxu0 0.0
    %145 = vmatpush1.msra.mxu0 0.0
    %146 = vmatprep.subr.mxu0 0.0
    %147 = vmatpush1.msra.mxu0 0.0
    %148 = vmatprep.subr.mxu0 0.0
    %149 = vmatpush1.msra.mxu0 0.0
    %150 = vmatprep.subr.mxu0 0.0
    %151 = vmatpush1.msra.mxu0 0.0
    %152 = vmatprep.subr.mxu0 0.0
    %153 = vmatpush1.msra.mxu0 0.0
    %154 = vmatprep.subr.mxu0 0.0
    %155 = vmatpush1.msra.mxu0 0.0
    %156 = vmatprep.subr.mxu0 0.0
    %157 = vmatpush1.msra.mxu0 0.0
    %158 = vmatprep.subr.mxu0 0.0
    %159 = vmatpush1.msra.mxu0 0.0
    %160 = vmatprep.subr.mxu0 0.0
    %161 = vmatpush1.msra.mxu0 0.0
    %162 = vmatprep.subr.mxu0 0.0
    %163 = vmatpush1.msra.mxu0 0.0
    %164 = vmatprep.subr.mxu0 0.0
    %165 = vmatpush1.msra.mxu0 0.0
    %166 = vmatprep.subr.mxu0 0.0
    %167 = vmatpush1.msra.mxu0 0.0
    %168 = vmatprep.subr.mxu0 0.0
    %169 = vmatpush1.msra.mxu0 0.0
    %170 = vmatprep.mubr.f32.mxu0 0.0
    %171 = vmatmul.mubr.f32.gmra.mrb[0].mxu0 %v51
    %v172 = vpop.f32.mrb[0].mxu0
    %v173 = vadd.f32 %v104, %v172
    %v174 = vpop.f32.mrb[0].mxu0
    %175 = vmatprep.mubr.f32.mxu0 0.0
    %176 = vmatmul.mubr.f32.gmra.mrb[0].mxu0 %v52
    %v177 = vpop.f32.mrb[0].mxu0
    %v178 = vadd.f32 %v104, %v177
    %v179 = vpop.f32.mrb[0].mxu0
    %180 = vmatprep.mubr.f32.mxu0 0.0
    %181 = vmatmul.mubr.f32.gmra.mrb[0].mxu0 %v53
    %v182 = vpop.f32.mrb[0].mxu0
    %v183 = vadd.f32 %v104, %v182
    %v184 = vpop.f32.mrb[0].mxu0
    %185 = vmatprep.mubr.f32.mxu0 0.0
    %186 = vmatmul.mubr.f32.gmra.mrb[0].mxu0 %v54
    %v187 = vpop.f32.mrb[0].mxu0
    %v188 = vadd.f32 %v104, %v187
    %v189 = vpop.f32.mrb[0].mxu0
    %190 = vmatprep.mubr.f32.mxu0 0.0
    %191 = vmatmul.mubr.f32.gmra.mrb[0].mxu0 %v55
    %v192 = vpop.f32.mrb[0].mxu0
    %v193 = vadd.f32 %v104, %v192
    %v194 = vpop.f32.mrb[0].mxu0
    %195 = vmatprep.mubr.f32.mxu0 0.0
    %196 = vmatmul.mubr.f32.gmra.mrb[0].mxu0 %v56
    %v197 = vpop.f32.mrb[0].mxu0
    %v198 = vadd.f32 %v104, %v197
    %v199 = vpop.f32.mrb[0].mxu0
    %200 = vmatprep.mubr.f32.mxu0 0.0
    %201 = vmatmul.mubr.f32.gmra.mrb[0].mxu0 %v57
    %v202 = vpop.f32.mrb[0].mxu0
    %v203 = vadd.f32 %v104, %v202
    %v204 = vpop.f32.mrb[0].mxu0
    %205 = vmatprep.mubr.f32.mxu0 0.0
    %206 = vmatmul.mubr.f32.gmra.mrb[0].mxu0 %v58
    %v207 = vpop.f32.mrb[0].mxu0
    %v208 = vadd.f32 %v104, %v207
    %v209 = vpop.f32.mrb[0].mxu0
    %210 = vmatprep.mubr.f32.mxu0 0.0
    %211 = vmatmul.mubr.f32.gmra.mrb[0].mxu0 %v59
    %v212 = vpop.f32.mrb[0].mxu0
    %v213 = vadd.f32 %v104, %v212
    %v214 = vpop.f32.mrb[0].mxu0
    %215 = vmatprep.mubr.f32.mxu0 0.0
    %216 = vmatmul.mubr.f32.gmra.mrb[0].mxu0 %v60
    %v217 = vpop.f32.mrb[0].mxu0
    %v218 = vadd.f32 %v104, %v217
    %v219 = vpop.f32.mrb[0].mxu0
    %220 = vmatprep.mubr.f32.mxu0 0.0
    %221 = vmatmul.mubr.f32.gmra.mrb[0].mxu0 %v61
    %v222 = vpop.f32.mrb[0].mxu0
    %v223 = vadd.f32 %v104, %v222
    %v224 = vpop.f32.mrb[0].mxu0
    %225 = vmatprep.mubr.f32.mxu0 0.0
    %226 = vmatmul.mubr.f32.gmra.mrb[0].mxu0 %v62
    %v227 = vpop.f32.mrb[0].mxu0
    %v228 = vadd.f32 %v104, %v227
    %v229 = vpop.f32.mrb[0].mxu0
    %230 = vmatprep.mubr.f32.mxu0 0.0
    %231 = vmatmul.mubr.f32.gmra.mrb[0].mxu0 %v63
    %v232 = vpop.f32.mrb[0].mxu0
    %v233 = vadd.f32 %v104, %v232
    %v234 = vpop.f32.mrb[0].mxu0
    %235 = vmatprep.mubr.f32.mxu0 0.0
    %236 = vmatmul.mubr.f32.gmra.mrb[0].mxu0 %v64
    %v237 = vpop.f32.mrb[0].mxu0
    %v238 = vadd.f32 %v104, %v237
    %v239 = vpop.f32.mrb[0].mxu0
    %240 = vmatprep.mubr.f32.mxu0 0.0
    %241 = vmatmul.mubr.f32.gmra.mrb[0].mxu0 %v65
    %v242 = vpop.f32.mrb[0].mxu0
    %v243 = vadd.f32 %v104, %v242
    %v244 = vpop.f32.mrb[0].mxu0
    %245 = vmatprep.mubr.f32.mxu0 0.0
    %246 = vmatmul.mubr.f32.gmra.mrb[0].mxu0 %v66
    %v247 = vpop.f32.mrb[0].mxu0
    %v248 = vadd.f32 %v104, %v247
    %v249 = vpop.f32.mrb[0].mxu0
    %250 = vmatprep.mubr.f32.mxu0 0.0
    %251 = vmatmul.mubr.f32.gmra.mrb[0].mxu0 %v67
    %v252 = vpop.f32.mrb[0].mxu0
    %v253 = vadd.f32 %v104, %v252
    %v254 = vpop.f32.mrb[0].mxu0
    %255 = vmatprep.mubr.f32.mxu0 0.0
    %256 = vmatmul.mubr.f32.gmra.mrb[0].mxu0 %v68
    %v257 = vpop.f32.mrb[0].mxu0
    %v258 = vadd.f32 %v104, %v257
    %v259 = vpop.f32.mrb[0].mxu0
    %260 = vmatprep.mubr.f32.mxu0 0.0
    %261 = vmatmul.mubr.f32.gmra.mrb[0].mxu0 %v69
    %v262 = vpop.f32.mrb[0].mxu0
    %v263 = vadd.f32 %v104, %v262
    %v264 = vpop.f32.mrb[0].mxu0
    %265 = vmatprep.mubr.f32.mxu0 0.0
    %266 = vmatmul.mubr.f32.gmra.mrb[0].mxu0 %v70
    %v267 = vpop.f32.mrb[0].mxu0
    %v268 = vadd.f32 %v104, %v267
    %v269 = vpop.f32.mrb[0].mxu0
    %270 = vmatprep.mubr.f32.mxu0 0.0
    %271 = vmatmul.mubr.f32.gmra.mrb[0].mxu0 %v71
    %v272 = vpop.f32.mrb[0].mxu0
    %v273 = vadd.f32 %v104, %v272
    %v274 = vpop.f32.mrb[0].mxu0
    %275 = vmatprep.mubr.f32.mxu0 0.0
    %276 = vmatmul.mubr.f32.gmra.mrb[0].mxu0 %v72
    %v277 = vpop.f32.mrb[0].mxu0
    %v278 = vadd.f32 %v104, %v277
    %v279 = vpop.f32.mrb[0].mxu0
    %280 = vmatprep.mubr.f32.mxu0 0.0
    %281 = vmatmul.mubr.f32.gmra.mrb[0].mxu0 %v73
    %v282 = vpop.f32.mrb[0].mxu0
    %v283 = vadd.f32 %v104, %v282
    %v284 = vpop.f32.mrb[0].mxu0
    %285 = vmatprep.mubr.f32.mxu0 0.0
    %286 = vmatmul.mubr.f32.gmra.mrb[0].mxu0 %v74
    %v287 = vpop.f32.mrb[0].mxu0
    %v288 = vadd.f32 %v104, %v287
    %v289 = vpop.f32.mrb[0].mxu0
    %290 = vmatprep.mubr.f32.mxu0 0.0
    %291 = vmatmul.mubr.f32.gmra.mrb[0].mxu0 %v75
    %v292 = vpop.f32.mrb[0].mxu0
    %v293 = vadd.f32 %v104, %v292
    %v294 = vpop.f32.mrb[0].mxu0
    %295 = vmatprep.mubr.f32.mxu0 0.0
    %296 = vmatmul.mubr.f32.gmra.mrb[0].mxu0 %v76
    %v297 = vpop.f32.mrb[0].mxu0
    %v298 = vadd.f32 %v104, %v297
    %v299 = vpop.f32.mrb[0].mxu0
    %300 = vmatprep.mubr.f32.mxu0 0.0
    %301 = vmatmul.mubr.f32.gmra.mrb[0].mxu0 %v77
    %v302 = vpop.f32.mrb[0].mxu0
    %v303 = vadd.f32 %v104, %v302
    %v304 = vpop.f32.mrb[0].mxu0
    %305 = vmatprep.mubr.f32.mxu0 0.0
    %306 = vmatmul.mubr.f32.gmra.mrb[0].mxu0 %v78
    %v307 = vpop.f32.mrb[0].mxu0
    %v308 = vadd.f32 %v104, %v307
    %v309 = vpop.f32.mrb[0].mxu0
    %310 = vmatprep.mubr.f32.mxu0 0.0
    %311 = vmatmul.mubr.f32.gmra.mrb[0].mxu0 %v79
    %v312 = vpop.f32.mrb[0].mxu0
    %v313 = vadd.f32 %v104, %v312
    %v314 = vpop.f32.mrb[0].mxu0
    %315 = vmatprep.mubr.f32.mxu0 0.0
    %316 = vmatmul.mubr.f32.gmra.mrb[0].mxu0 %v80
    %v317 = vpop.f32.mrb[0].mxu0
    %v318 = vadd.f32 %v104, %v317
    %v319 = vpop.f32.mrb[0].mxu0
    %320 = vmatprep.mubr.f32.mxu0 0.0
    %321 = vmatmul.mubr.f32.gmra.mrb[0].mxu0 %v81
    %v322 = vpop.f32.mrb[0].mxu0
    %v323 = vadd.f32 %v104, %v322
    %v324 = vpop.f32.mrb[0].mxu0
    %325 = vmatprep.mubr.f32.mxu0 0.0
    %326 = vmatmul.mubr.f32.gmra.mrb[0].mxu0 %v82
    %v327 = vpop.f32.mrb[0].mxu0
    %v328 = vadd.f32 %v104, %v327
    %v329 = vpop.f32.mrb[0].mxu0
    %330 = vdwg.mxu0
    %v331 = vmax.f32 %v173, 0.0
    %v332 = vmax.f32 %v178, 0.0
    %v333 = vmax.f32 %v183, 0.0
    %v334 = vmax.f32 %v188, 0.0
    %v335 = vmax.f32 %v193, 0.0
    %v336 = vmax.f32 %v198, 0.0
    %v337 = vmax.f32 %v203, 0.0
    %v338 = vmax.f32 %v208, 0.0
    %v339 = vmax.f32 %v213, 0.0
    %v340 = vmax.f32 %v218, 0.0
    %v341 = vmax.f32 %v223, 0.0
    %v342 = vmax.f32 %v228, 0.0
    %v343 = vmax.f32 %v233, 0.0
    %v344 = vmax.f32 %v238, 0.0
    %v345 = vmax.f32 %v243, 0.0
    %v346 = vmax.f32 %v248, 0.0
    %v347 = vmax.f32 %v253, 0.0
    %v348 = vmax.f32 %v258, 0.0
    %v349 = vmax.f32 %v263, 0.0
    %v350 = vmax.f32 %v268, 0.0
    %v351 = vmax.f32 %v273, 0.0
    %v352 = vmax.f32 %v278, 0.0
    %v353 = vmax.f32 %v283, 0.0
    %v354 = vmax.f32 %v288, 0.0
    %v355 = vmax.f32 %v293, 0.0
    %v356 = vmax.f32 %v298, 0.0
    %v357 = vmax.f32 %v303, 0.0
    %v358 = vmax.f32 %v308, 0.0
    %v359 = vmax.f32 %v313, 0.0
    %v360 = vmax.f32 %v318, 0.0
    %v361 = vmax.f32 %v323, 0.0
    %v362 = vmax.f32 %v328, 0.0
    %v363 = vld [vmem:[#allocation5] sm:$0xff]
    %v364 = vld [vmem:[#allocation5 + $0x8] sm:$0xff]
    %v365 = vld [vmem:[#allocation5 + $0x10] sm:$0xff]
    %v366 = vld [vmem:[#allocation5 + $0x18] sm:$0xff]
    %v367 = vld [vmem:[#allocation5 + $0x20] sm:$0xff]
    %v368 = vld [vmem:[#allocation5 + $0x28] sm:$0xff]
    %v369 = vld [vmem:[#allocation5 + $0x30] sm:$0xff]
    %v370 = vld [vmem:[#allocation5 + $0x38] sm:$0xff]
    %v371 = vld [vmem:[#allocation5 + $0x40] sm:$0xff]
    %v372 = vld [vmem:[#allocation5 + $0x48] sm:$0xff]
    %v373 = vld [vmem:[#allocation5 + $0x50] sm:$0xff]
    %v374 = vld [vmem:[#allocation5 + $0x58] sm:$0xff]
    %v375 = vld [vmem:[#allocation5 + $0x60] sm:$0xff]
    %v376 = vld [vmem:[#allocation5 + $0x68] sm:$0xff]
    %v377 = vld [vmem:[#allocation5 + $0x70] sm:$0xff]
    %v378 = vld [vmem:[#allocation5 + $0x78] sm:$0xff]
    %379 = vmatprep.subr.mxu0 0.0
    %380 = vmatpush1.msra.mxu0 %v363
    %381 = vmatprep.subr.mxu0 0.0
    %382 = vmatpush1.msra.mxu0 %v364
    %383 = vmatprep.subr.mxu0 0.0
    %384 = vmatpush1.msra.mxu0 %v365
    %385 = vmatprep.subr.mxu0 0.0
    %386 = vmatpush1.msra.mxu0 %v366
    %387 = vmatprep.subr.mxu0 0.0
    %388 = vmatpush1.msra.mxu0 %v367
    %389 = vmatprep.subr.mxu0 0.0
    %390 = vmatpush1.msra.mxu0 %v368
    %391 = vmatprep.subr.mxu0 0.0
    %392 = vmatpush1.msra.mxu0 %v369
    %393 = vmatprep.subr.mxu0 0.0
    %394 = vmatpush1.msra.mxu0 %v370
    %395 = vmatprep.subr.mxu0 0.0
    %396 = vmatpush1.msra.mxu0 %v371
    %397 = vmatprep.subr.mxu0 0.0
    %398 = vmatpush1.msra.mxu0 %v372
    %399 = vmatprep.subr.mxu0 0.0
    %400 = vmatpush1.msra.mxu0 %v373
    %401 = vmatprep.subr.mxu0 0.0
    %402 = vmatpush1.msra.mxu0 %v374
    %403 = vmatprep.subr.mxu0 0.0
    %404 = vmatpush1.msra.mxu0 %v375
    %405 = vmatprep.subr.mxu0 0.0
    %406 = vmatpush1.msra.mxu0 %v376
    %407 = vmatprep.subr.mxu0 0.0
    %408 = vmatpush1.msra.mxu0 %v377
    %409 = vmatprep.subr.mxu0 0.0
    %410 = vmatpush1.msra.mxu0 %v378
    %411 = vmatprep.subr.mxu0 0.0
    %412 = vmatpush1.msra.mxu0 0.0
    %413 = vmatprep.subr.mxu0 0.0
    %414 = vmatpush1.msra.mxu0 0.0
    %415 = vmatprep.subr.mxu0 0.0
    %416 = vmatpush1.msra.mxu0 0.0
    %417 = vmatprep.subr.mxu0 0.0
    %418 = vmatpush1.msra.mxu0 0.0
    %419 = vmatprep.subr.mxu0 0.0
    %420 = vmatpush1.msra.mxu0 0.0
    %421 = vmatprep.subr.mxu0 0.0
    %422 = vmatpush1.msra.mxu0 0.0
    %423 = vmatprep.subr.mxu0 0.0
    %424 = vmatpush1.msra.mxu0 0.0
    %425 = vmatprep.subr.mxu0 0.0
    %426 = vmatpush1.msra.mxu0 0.0
    %427 = vmatprep.subr.mxu0 0.0
    %428 = vmatpush1.msra.mxu0 0.0
    %429 = vmatprep.subr.mxu0 0.0
    %430 = vmatpush1.msra.mxu0 0.0
    %431 = vmatprep.subr.mxu0 0.0
    %432 = vmatpush1.msra.mxu0 0.0
    %433 = vmatprep.subr.mxu0 0.0
    %434 = vmatpush1.msra.mxu0 0.0
    %435 = vmatprep.subr.mxu0 0.0
    %436 = vmatpush1.msra.mxu0 0.0
    %437 = vmatprep.subr.mxu0 0.0
    %438 = vmatpush1.msra.mxu0 0.0
    %439 = vmatprep.subr.mxu0 0.0
    %440 = vmatpush1.msra.mxu0 0.0
    %441 = vmatprep.subr.mxu0 0.0
    %442 = vmatpush1.msra.mxu0 0.0
    %443 = vmatprep.mubr.f32.mxu0 0.0
    %444 = vmatmul.mubr.f32.gmra.mrb[0].mxu0 %v331
    %v445 = vpop.f32.mrb[0].mxu0
    %v446 = vadd.f32 0.0, %v445
    %v447 = vpop.f32.mrb[0].mxu0
    %448 = vmatprep.mubr.f32.mxu0 0.0
    %449 = vmatmul.mubr.f32.gmra.mrb[0].mxu0 %v332
    %v450 = vpop.f32.mrb[0].mxu0
    %v451 = vadd.f32 0.0, %v450
    %v452 = vpop.f32.mrb[0].mxu0
    %453 = vmatprep.mubr.f32.mxu0 0.0
    %454 = vmatmul.mubr.f32.gmra.mrb[0].mxu0 %v333
    %v455 = vpop.f32.mrb[0].mxu0
    %v456 = vadd.f32 0.0, %v455
    %v457 = vpop.f32.mrb[0].mxu0
    %458 = vmatprep.mubr.f32.mxu0 0.0
    %459 = vmatmul.mubr.f32.gmra.mrb[0].mxu0 %v334
    %v460 = vpop.f32.mrb[0].mxu0
    %v461 = vadd.f32 0.0, %v460
    %v462 = vpop.f32.mrb[0].mxu0
    %463 = vmatprep.mubr.f32.mxu0 0.0
    %464 = vmatmul.mubr.f32.gmra.mrb[0].mxu0 %v335
    %v465 = vpop.f32.mrb[0].mxu0
    %v466 = vadd.f32 0.0, %v465
    %v467 = vpop.f32.mrb[0].mxu0
    %468 = vmatprep.mubr.f32.mxu0 0.0
    %469 = vmatmul.mubr.f32.gmra.mrb[0].mxu0 %v336
    %v470 = vpop.f32.mrb[0].mxu0
    %v471 = vadd.f32 0.0, %v470
    %v472 = vpop.f32.mrb[0].mxu0
    %473 = vmatprep.mubr.f32.mxu0 0.0
    %474 = vmatmul.mubr.f32.gmra.mrb[0].mxu0 %v337
    %v475 = vpop.f32.mrb[0].mxu0
    %v476 = vadd.f32 0.0, %v475
    %v477 = vpop.f32.mrb[0].mxu0
    %478 = vmatprep.mubr.f32.mxu0 0.0
    %479 = vmatmul.mubr.f32.gmra.mrb[0].mxu0 %v338
    %v480 = vpop.f32.mrb[0].mxu0
    %v481 = vadd.f32 0.0, %v480
    %v482 = vpop.f32.mrb[0].mxu0
    %483 = vmatprep.mubr.f32.mxu0 0.0
    %484 = vmatmul.mubr.f32.gmra.mrb[0].mxu0 %v339
    %v485 = vpop.f32.mrb[0].mxu0
    %v486 = vadd.f32 0.0, %v485
    %v487 = vpop.f32.mrb[0].mxu0
    %488 = vmatprep.mubr.f32.mxu0 0.0
    %489 = vmatmul.mubr.f32.gmra.mrb[0].mxu0 %v340
    %v490 = vpop.f32.mrb[0].mxu0
    %v491 = vadd.f32 0.0, %v490
    %v492 = vpop.f32.mrb[0].mxu0
    %493 = vmatprep.mubr.f32.mxu0 0.0
    %494 = vmatmul.mubr.f32.gmra.mrb[0].mxu0 %v341
    %v495 = vpop.f32.mrb[0].mxu0
    %v496 = vadd.f32 0.0, %v495
    %v497 = vpop.f32.mrb[0].mxu0
    %498 = vmatprep.mubr.f32.mxu0 0.0
    %499 = vmatmul.mubr.f32.gmra.mrb[0].mxu0 %v342
    %v500 = vpop.f32.mrb[0].mxu0
    %v501 = vadd.f32 0.0, %v500
    %v502 = vpop.f32.mrb[0].mxu0
    %503 = vmatprep.mubr.f32.mxu0 0.0
    %504 = vmatmul.mubr.f32.gmra.mrb[0].mxu0 %v343
    %v505 = vpop.f32.mrb[0].mxu0
    %v506 = vadd.f32 0.0, %v505
    %v507 = vpop.f32.mrb[0].mxu0
    %508 = vmatprep.mubr.f32.mxu0 0.0
    %509 = vmatmul.mubr.f32.gmra.mrb[0].mxu0 %v344
    %v510 = vpop.f32.mrb[0].mxu0
    %v511 = vadd.f32 0.0, %v510
    %v512 = vpop.f32.mrb[0].mxu0
    %513 = vmatprep.mubr.f32.mxu0 0.0
    %514 = vmatmul.mubr.f32.gmra.mrb[0].mxu0 %v345
    %v515 = vpop.f32.mrb[0].mxu0
    %v516 = vadd.f32 0.0, %v515
    %v517 = vpop.f32.mrb[0].mxu0
    %518 = vmatprep.mubr.f32.mxu0 0.0
    %519 = vmatmul.mubr.f32.gmra.mrb[0].mxu0 %v346
    %v520 = vpop.f32.mrb[0].mxu0
    %v521 = vadd.f32 0.0, %v520
    %v522 = vpop.f32.mrb[0].mxu0
    %523 = vmatprep.mubr.f32.mxu0 0.0
    %524 = vmatmul.mubr.f32.gmra.mrb[0].mxu0 %v347
    %v525 = vpop.f32.mrb[0].mxu0
    %v526 = vadd.f32 0.0, %v525
    %v527 = vpop.f32.mrb[0].mxu0
    %528 = vmatprep.mubr.f32.mxu0 0.0
    %529 = vmatmul.mubr.f32.gmra.mrb[0].mxu0 %v348
    %v530 = vpop.f32.mrb[0].mxu0
    %v531 = vadd.f32 0.0, %v530
    %v532 = vpop.f32.mrb[0].mxu0
    %533 = vmatprep.mubr.f32.mxu0 0.0
    %534 = vmatmul.mubr.f32.gmra.mrb[0].mxu0 %v349
    %v535 = vpop.f32.mrb[0].mxu0
    %v536 = vadd.f32 0.0, %v535
    %v537 = vpop.f32.mrb[0].mxu0
    %538 = vmatprep.mubr.f32.mxu0 0.0
    %539 = vmatmul.mubr.f32.gmra.mrb[0].mxu0 %v350
    %v540 = vpop.f32.mrb[0].mxu0
    %v541 = vadd.f32 0.0, %v540
    %v542 = vpop.f32.mrb[0].mxu0
    %543 = vmatprep.mubr.f32.mxu0 0.0
    %544 = vmatmul.mubr.f32.gmra.mrb[0].mxu0 %v351
    %v545 = vpop.f32.mrb[0].mxu0
    %v546 = vadd.f32 0.0, %v545
    %v547 = vpop.f32.mrb[0].mxu0
    %548 = vmatprep.mubr.f32.mxu0 0.0
    %549 = vmatmul.mubr.f32.gmra.mrb[0].mxu0 %v352
    %v550 = vpop.f32.mrb[0].mxu0
    %v551 = vadd.f32 0.0, %v550
    %v552 = vpop.f32.mrb[0].mxu0
    %553 = vmatprep.mubr.f32.mxu0 0.0
    %554 = vmatmul.mubr.f32.gmra.mrb[0].mxu0 %v353
    %v555 = vpop.f32.mrb[0].mxu0
    %v556 = vadd.f32 0.0, %v555
    %v557 = vpop.f32.mrb[0].mxu0
    %558 = vmatprep.mubr.f32.mxu0 0.0
    %559 = vmatmul.mubr.f32.gmra.mrb[0].mxu0 %v354
    %v560 = vpop.f32.mrb[0].mxu0
    %v561 = vadd.f32 0.0, %v560
    %v562 = vpop.f32.mrb[0].mxu0
    %563 = vmatprep.mubr.f32.mxu0 0.0
    %564 = vmatmul.mubr.f32.gmra.mrb[0].mxu0 %v355
    %v565 = vpop.f32.mrb[0].mxu0
    %v566 = vadd.f32 0.0, %v565
    %v567 = vpop.f32.mrb[0].mxu0
    %568 = vmatprep.mubr.f32.mxu0 0.0
    %569 = vmatmul.mubr.f32.gmra.mrb[0].mxu0 %v356
    %v570 = vpop.f32.mrb[0].mxu0
    %v571 = vadd.f32 0.0, %v570
    %v572 = vpop.f32.mrb[0].mxu0
    %573 = vmatprep.mubr.f32.mxu0 0.0
    %574 = vmatmul.mubr.f32.gmra.mrb[0].mxu0 %v357
    %v575 = vpop.f32.mrb[0].mxu0
    %v576 = vadd.f32 0.0, %v575
    %v577 = vpop.f32.mrb[0].mxu0
    %578 = vmatprep.mubr.f32.mxu0 0.0
    %579 = vmatmul.mubr.f32.gmra.mrb[0].mxu0 %v358
    %v580 = vpop.f32.mrb[0].mxu0
    %v581 = vadd.f32 0.0, %v580
    %v582 = vpop.f32.mrb[0].mxu0
    %583 = vmatprep.mubr.f32.mxu0 0.0
    %584 = vmatmul.mubr.f32.gmra.mrb[0].mxu0 %v359
    %v585 = vpop.f32.mrb[0].mxu0
    %v586 = vadd.f32 0.0, %v585
    %v587 = vpop.f32.mrb[0].mxu0
    %588 = vmatprep.mubr.f32.mxu0 0.0
    %589 = vmatmul.mubr.f32.gmra.mrb[0].mxu0 %v360
    %v590 = vpop.f32.mrb[0].mxu0
    %v591 = vadd.f32 0.0, %v590
    %v592 = vpop.f32.mrb[0].mxu0
    %593 = vmatprep.mubr.f32.mxu0 0.0
    %594 = vmatmul.mubr.f32.gmra.mrb[0].mxu0 %v361
    %v595 = vpop.f32.mrb[0].mxu0
    %v596 = vadd.f32 0.0, %v595
    %v597 = vpop.f32.mrb[0].mxu0
    %598 = vmatprep.mubr.f32.mxu0 0.0
    %599 = vmatmul.mubr.f32.gmra.mrb[0].mxu0 %v362
    %v600 = vpop.f32.mrb[0].mxu0
    %v601 = vadd.f32 0.0, %v600
    %v602 = vpop.f32.mrb[0].mxu0
    %603 = vdwg.mxu0
    %604 = vst [vmem:[#allocation7] sm:$0xff] %v446
    %605 = vst [vmem:[#allocation7 + $0x8] sm:$0xff] %v451
    %606 = vst [vmem:[#allocation7 + $0x10] sm:$0xff] %v456
    %607 = vst [vmem:[#allocation7 + $0x18] sm:$0xff] %v461
    %608 = vst [vmem:[#allocation7 + $0x20] sm:$0xff] %v466
    %609 = vst [vmem:[#allocation7 + $0x28] sm:$0xff] %v471
    %610 = vst [vmem:[#allocation7 + $0x30] sm:$0xff] %v476
    %611 = vst [vmem:[#allocation7 + $0x38] sm:$0xff] %v481
    %612 = vst [vmem:[#allocation7 + $0x40] sm:$0xff] %v486
    %613 = vst [vmem:[#allocation7 + $0x48] sm:$0xff] %v491
    %614 = vst [vmem:[#allocation7 + $0x50] sm:$0xff] %v496
    %615 = vst [vmem:[#allocation7 + $0x58] sm:$0xff] %v501
    %616 = vst [vmem:[#allocation7 + $0x60] sm:$0xff] %v506
    %617 = vst [vmem:[#allocation7 + $0x68] sm:$0xff] %v511
    %618 = vst [vmem:[#allocation7 + $0x70] sm:$0xff] %v516
    %619 = vst [vmem:[#allocation7 + $0x78] sm:$0xff] %v521
    %620 = vst [vmem:[#allocation7 + $0x80] sm:$0xff] %v526
    %621 = vst [vmem:[#allocation7 + $0x88] sm:$0xff] %v531
    %622 = vst [vmem:[#allocation7 + $0x90] sm:$0xff] %v536
    %623 = vst [vmem:[#allocation7 + $0x98] sm:$0xff] %v541
    %624 = vst [vmem:[#allocation7 + $0xa0] sm:$0xff] %v546
    %625 = vst [vmem:[#allocation7 + $0xa8] sm:$0xff] %v551
    %626 = vst [vmem:[#allocation7 + $0xb0] sm:$0xff] %v556
    %627 = vst [vmem:[#allocation7 + $0xb8] sm:$0xff] %v561
    %628 = vst [vmem:[#allocation7 + $0xc0] sm:$0xff] %v566
    %629 = vst [vmem:[#allocation7 + $0xc8] sm:$0xff] %v571
    %630 = vst [vmem:[#allocation7 + $0xd0] sm:$0xff] %v576
    %631 = vst [vmem:[#allocation7 + $0xd8] sm:$0xff] %v581
    %632 = vst [vmem:[#allocation7 + $0xe0] sm:$0xff] %v586
    %633 = vst [vmem:[#allocation7 + $0xe8] sm:$0xff] %v591
    %634 = vst [vmem:[#allocation7 + $0xf0] sm:$0xff] %v596
    %635 = vst [vmem:[#allocation7 + $0xf8] sm:$0xff] %v601
    %v636 = vld [vmem:[%s4] sm:$0xff]
    %v637 = vld [vmem:[%s4 + $0x8] sm:$0xff]
    %v638 = vld [vmem:[%s4 + $0x10] sm:$0xff]
    %v639 = vld [vmem:[%s4 + $0x18] sm:$0xff]
    %v640 = vld [vmem:[%s4 + $0x20] sm:$0xff]
    %v641 = vld [vmem:[%s4 + $0x28] sm:$0xff]
    %v642 = vld [vmem:[%s4 + $0x30] sm:$0xff]
    %v643 = vld [vmem:[%s4 + $0x38] sm:$0xff]
    %v644 = vld [vmem:[%s4 + $0x40] sm:$0xff]
    %v645 = vld [vmem:[%s4 + $0x48] sm:$0xff]
    %v646 = vld [vmem:[%s4 + $0x50] sm:$0xff]
    %v647 = vld [vmem:[%s4 + $0x58] sm:$0xff]
    %v648 = vld [vmem:[%s4 + $0x60] sm:$0xff]
    %v649 = vld [vmem:[%s4 + $0x68] sm:$0xff]
    %v650 = vld [vmem:[%s4 + $0x70] sm:$0xff]
    %v651 = vld [vmem:[%s4 + $0x78] sm:$0xff]
    %652 = vmatprep.subr.mxu0 0.0
    %653 = vmatpush1.msra.mxu0 %v636
    %654 = vmatprep.subr.mxu0 0.0
    %655 = vmatpush1.msra.mxu0 %v637
    %656 = vmatprep.subr.mxu0 0.0
    %657 = vmatpush1.msra.mxu0 %v638
    %658 = vmatprep.subr.mxu0 0.0
    %659 = vmatpush1.msra.mxu0 %v639
    %660 = vmatprep.subr.mxu0 0.0
    %661 = vmatpush1.msra.mxu0 %v640
    %662 = vmatprep.subr.mxu0 0.0
    %663 = vmatpush1.msra.mxu0 %v641
    %664 = vmatprep.subr.mxu0 0.0
    %665 = vmatpush1.msra.mxu0 %v642
    %666 = vmatprep.subr.mxu0 0.0
    %667 = vmatpush1.msra.mxu0 %v643
    %668 = vmatprep.subr.mxu0 0.0
    %669 = vmatpush1.msra.mxu0 %v644
    %670 = vmatprep.subr.mxu0 0.0
    %671 = vmatpush1.msra.mxu0 %v645
    %672 = vmatprep.subr.mxu0 0.0
    %673 = vmatpush1.msra.mxu0 %v646
    %674 = vmatprep.subr.mxu0 0.0
    %675 = vmatpush1.msra.mxu0 %v647
    %676 = vmatprep.subr.mxu0 0.0
    %677 = vmatpush1.msra.mxu0 %v648
    %678 = vmatprep.subr.mxu0 0.0
    %679 = vmatpush1.msra.mxu0 %v649
    %680 = vmatprep.subr.mxu0 0.0
    %681 = vmatpush1.msra.mxu0 %v650
    %682 = vmatprep.subr.mxu0 0.0
    %683 = vmatpush1.msra.mxu0 %v651
    %684 = vmatprep.subr.mxu0 0.0
    %685 = vmatpush1.msra.mxu0 0.0
    %686 = vmatprep.subr.mxu0 0.0
    %687 = vmatpush1.msra.mxu0 0.0
    %688 = vmatprep.subr.mxu0 0.0
    %689 = vmatpush1.msra.mxu0 0.0
    %690 = vmatprep.subr.mxu0 0.0
    %691 = vmatpush1.msra.mxu0 0.0
    %692 = vmatprep.subr.mxu0 0.0
    %693 = vmatpush1.msra.mxu0 0.0
    %694 = vmatprep.subr.mxu0 0.0
    %695 = vmatpush1.msra.mxu0 0.0
    %696 = vmatprep.subr.mxu0 0.0
    %697 = vmatpush1.msra.mxu0 0.0
    %698 = vmatprep.subr.mxu0 0.0
    %699 = vmatpush1.msra.mxu0 0.0
    %700 = vmatprep.subr.mxu0 0.0
    %701 = vmatpush1.msra.mxu0 0.0
    %702 = vmatprep.subr.mxu0 0.0
    %703 = vmatpush1.msra.mxu0 0.0
    %704 = vmatprep.subr.mxu0 0.0
    %705 = vmatpush1.msra.mxu0 0.0
    %706 = vmatprep.subr.mxu0 0.0
    %707 = vmatpush1.msra.mxu0 0.0
    %708 = vmatprep.subr.mxu0 0.0
    %709 = vmatpush1.msra.mxu0 0.0
    %710 = vmatprep.subr.mxu0 0.0
    %711 = vmatpush1.msra.mxu0 0.0
    %712 = vmatprep.subr.mxu0 0.0
    %713 = vmatpush1.msra.mxu0 0.0
    %714 = vmatprep.subr.mxu0 0.0
    %715 = vmatpush1.msra.mxu0 0.0
    %716 = vmatprep.mubr.f32.mxu0 0.0
    %717 = vmatmul.mubr.f32.gmra.mrb[0].mxu0 %v331
    %v718 = vpop.f32.mrb[0].mxu0
    %v719 = vadd.f32 0.0, %v718
    %v720 = vpop.f32.mrb[0].mxu0
    %721 = vmatprep.mubr.f32.mxu0 0.0
    %722 = vmatmul.mubr.f32.gmra.mrb[0].mxu0 %v332
    %v723 = vpop.f32.mrb[0].mxu0
    %v724 = vadd.f32 0.0, %v723
    %v725 = vpop.f32.mrb[0].mxu0
    %726 = vmatprep.mubr.f32.mxu0 0.0
    %727 = vmatmul.mubr.f32.gmra.mrb[0].mxu0 %v333
    %v728 = vpop.f32.mrb[0].mxu0
    %v729 = vadd.f32 0.0, %v728
    %v730 = vpop.f32.mrb[0].mxu0
    %731 = vmatprep.mubr.f32.mxu0 0.0
    %732 = vmatmul.mubr.f32.gmra.mrb[0].mxu0 %v334
    %v733 = vpop.f32.mrb[0].mxu0
    %v734 = vadd.f32 0.0, %v733
    %v735 = vpop.f32.mrb[0].mxu0
    %736 = vmatprep.mubr.f32.mxu0 0.0
    %737 = vmatmul.mubr.f32.gmra.mrb[0].mxu0 %v335
    %v738 = vpop.f32.mrb[0].mxu0
    %v739 = vadd.f32 0.0, %v738
    %v740 = vpop.f32.mrb[0].mxu0
    %741 = vmatprep.mubr.f32.mxu0 0.0
    %742 = vmatmul.mubr.f32.gmra.mrb[0].mxu0 %v336
    %v743 = vpop.f32.mrb[0].mxu0
    %v744 = vadd.f32 0.0, %v743
    %v745 = vpop.f32.mrb[0].mxu0
    %746 = vmatprep.mubr.f32.mxu0 0.0
    %747 = vmatmul.mubr.f32.gmra.mrb[0].mxu0 %v337
    %v748 = vpop.f32.mrb[0].mxu0
    %v749 = vadd.f32 0.0, %v748
    %v750 = vpop.f32.mrb[0].mxu0
    %751 = vmatprep.mubr.f32.mxu0 0.0
    %752 = vmatmul.mubr.f32.gmra.mrb[0].mxu0 %v338
    %v753 = vpop.f32.mrb[0].mxu0
    %v754 = vadd.f32 0.0, %v753
    %v755 = vpop.f32.mrb[0].mxu0
    %756 = vmatprep.mubr.f32.mxu0 0.0
    %757 = vmatmul.mubr.f32.gmra.mrb[0].mxu0 %v339
    %v758 = vpop.f32.mrb[0].mxu0
    %v759 = vadd.f32 0.0, %v758
    %v760 = vpop.f32.mrb[0].mxu0
    %761 = vmatprep.mubr.f32.mxu0 0.0
    %762 = vmatmul.mubr.f32.gmra.mrb[0].mxu0 %v340
    %v763 = vpop.f32.mrb[0].mxu0
    %v764 = vadd.f32 0.0, %v763
    %v765 = vpop.f32.mrb[0].mxu0
    %766 = vmatprep.mubr.f32.mxu0 0.0
    %767 = vmatmul.mubr.f32.gmra.mrb[0].mxu0 %v341
    %v768 = vpop.f32.mrb[0].mxu0
    %v769 = vadd.f32 0.0, %v768
    %v770 = vpop.f32.mrb[0].mxu0
    %771 = vmatprep.mubr.f32.mxu0 0.0
    %772 = vmatmul.mubr.f32.gmra.mrb[0].mxu0 %v342
    %v773 = vpop.f32.mrb[0].mxu0
    %v774 = vadd.f32 0.0, %v773
    %v775 = vpop.f32.mrb[0].mxu0
    %776 = vmatprep.mubr.f32.mxu0 0.0
    %777 = vmatmul.mubr.f32.gmra.mrb[0].mxu0 %v343
    %v778 = vpop.f32.mrb[0].mxu0
    %v779 = vadd.f32 0.0, %v778
    %v780 = vpop.f32.mrb[0].mxu0
    %781 = vmatprep.mubr.f32.mxu0 0.0
    %782 = vmatmul.mubr.f32.gmra.mrb[0].mxu0 %v344
    %v783 = vpop.f32.mrb[0].mxu0
    %v784 = vadd.f32 0.0, %v783
    %v785 = vpop.f32.mrb[0].mxu0
    %786 = vmatprep.mubr.f32.mxu0 0.0
    %787 = vmatmul.mubr.f32.gmra.mrb[0].mxu0 %v345
    %v788 = vpop.f32.mrb[0].mxu0
    %v789 = vadd.f32 0.0, %v788
    %v790 = vpop.f32.mrb[0].mxu0
    %791 = vmatprep.mubr.f32.mxu0 0.0
    %792 = vmatmul.mubr.f32.gmra.mrb[0].mxu0 %v346
    %v793 = vpop.f32.mrb[0].mxu0
    %v794 = vadd.f32 0.0, %v793
    %v795 = vpop.f32.mrb[0].mxu0
    %796 = vmatprep.mubr.f32.mxu0 0.0
    %797 = vmatmul.mubr.f32.gmra.mrb[0].mxu0 %v347
    %v798 = vpop.f32.mrb[0].mxu0
    %v799 = vadd.f32 0.0, %v798
    %v800 = vpop.f32.mrb[0].mxu0
    %801 = vmatprep.mubr.f32.mxu0 0.0
    %802 = vmatmul.mubr.f32.gmra.mrb[0].mxu0 %v348
    %v803 = vpop.f32.mrb[0].mxu0
    %v804 = vadd.f32 0.0, %v803
    %v805 = vpop.f32.mrb[0].mxu0
    %806 = vmatprep.mubr.f32.mxu0 0.0
    %807 = vmatmul.mubr.f32.gmra.mrb[0].mxu0 %v349
    %v808 = vpop.f32.mrb[0].mxu0
    %v809 = vadd.f32 0.0, %v808
    %v810 = vpop.f32.mrb[0].mxu0
    %811 = vmatprep.mubr.f32.mxu0 0.0
    %812 = vmatmul.mubr.f32.gmra.mrb[0].mxu0 %v350
    %v813 = vpop.f32.mrb[0].mxu0
    %v814 = vadd.f32 0.0, %v813
    %v815 = vpop.f32.mrb[0].mxu0
    %816 = vmatprep.mubr.f32.mxu0 0.0
    %817 = vmatmul.mubr.f32.gmra.mrb[0].mxu0 %v351
    %v818 = vpop.f32.mrb[0].mxu0
    %v819 = vadd.f32 0.0, %v818
    %v820 = vpop.f32.mrb[0].mxu0
    %821 = vmatprep.mubr.f32.mxu0 0.0
    %822 = vmatmul.mubr.f32.gmra.mrb[0].mxu0 %v352
    %v823 = vpop.f32.mrb[0].mxu0
    %v824 = vadd.f32 0.0, %v823
    %v825 = vpop.f32.mrb[0].mxu0
    %826 = vmatprep.mubr.f32.mxu0 0.0
    %827 = vmatmul.mubr.f32.gmra.mrb[0].mxu0 %v353
    %v828 = vpop.f32.mrb[0].mxu0
    %v829 = vadd.f32 0.0, %v828
    %v830 = vpop.f32.mrb[0].mxu0
    %831 = vmatprep.mubr.f32.mxu0 0.0
    %832 = vmatmul.mubr.f32.gmra.mrb[0].mxu0 %v354
    %v833 = vpop.f32.mrb[0].mxu0
    %v834 = vadd.f32 0.0, %v833
    %v835 = vpop.f32.mrb[0].mxu0
    %836 = vmatprep.mubr.f32.mxu0 0.0
    %837 = vmatmul.mubr.f32.gmra.mrb[0].mxu0 %v355
    %v838 = vpop.f32.mrb[0].mxu0
    %v839 = vadd.f32 0.0, %v838
    %v840 = vpop.f32.mrb[0].mxu0
    %841 = vmatprep.mubr.f32.mxu0 0.0
    %842 = vmatmul.mubr.f32.gmra.mrb[0].mxu0 %v356
    %v843 = vpop.f32.mrb[0].mxu0
    %v844 = vadd.f32 0.0, %v843
    %v845 = vpop.f32.mrb[0].mxu0
    %846 = vmatprep.mubr.f32.mxu0 0.0
    %847 = vmatmul.mubr.f32.gmra.mrb[0].mxu0 %v357
    %v848 = vpop.f32.mrb[0].mxu0
    %v849 = vadd.f32 0.0, %v848
    %v850 = vpop.f32.mrb[0].mxu0
    %851 = vmatprep.mubr.f32.mxu0 0.0
    %852 = vmatmul.mubr.f32.gmra.mrb[0].mxu0 %v358
    %v853 = vpop.f32.mrb[0].mxu0
    %v854 = vadd.f32 0.0, %v853
    %v855 = vpop.f32.mrb[0].mxu0
    %856 = vmatprep.mubr.f32.mxu0 0.0
    %857 = vmatmul.mubr.f32.gmra.mrb[0].mxu0 %v359
    %v858 = vpop.f32.mrb[0].mxu0
    %v859 = vadd.f32 0.0, %v858
    %v860 = vpop.f32.mrb[0].mxu0
    %861 = vmatprep.mubr.f32.mxu0 0.0
    %862 = vmatmul.mubr.f32.gmra.mrb[0].mxu0 %v360
    %v863 = vpop.f32.mrb[0].mxu0
    %v864 = vadd.f32 0.0, %v863
    %v865 = vpop.f32.mrb[0].mxu0
    %866 = vmatprep.mubr.f32.mxu0 0.0
    %867 = vmatmul.mubr.f32.gmra.mrb[0].mxu0 %v361
    %v868 = vpop.f32.mrb[0].mxu0
    %v869 = vadd.f32 0.0, %v868
    %v870 = vpop.f32.mrb[0].mxu0
    %871 = vmatprep.mubr.f32.mxu0 0.0
    %872 = vmatmul.mubr.f32.gmra.mrb[0].mxu0 %v362
    %v873 = vpop.f32.mrb[0].mxu0
    %v874 = vadd.f32 0.0, %v873
    %v875 = vpop.f32.mrb[0].mxu0
    %876 = vdwg.mxu0
    %vm877 = vcmask 7168
    %878 = vst.msk [vmem:[%s6] sm:$0xff] %vm877, %v719
    %879 = vst.msk [vmem:[%s6 + $0x8] sm:$0xff] %vm877, %v724
    %880 = vst.msk [vmem:[%s6 + $0x10] sm:$0xff] %vm877, %v729
    %881 = vst.msk [vmem:[%s6 + $0x18] sm:$0xff] %vm877, %v734
    %882 = vst.msk [vmem:[%s6 + $0x20] sm:$0xff] %vm877, %v739
    %883 = vst.msk [vmem:[%s6 + $0x28] sm:$0xff] %vm877, %v744
    %884 = vst.msk [vmem:[%s6 + $0x30] sm:$0xff] %vm877, %v749
    %885 = vst.msk [vmem:[%s6 + $0x38] sm:$0xff] %vm877, %v754
    %886 = vst.msk [vmem:[%s6 + $0x40] sm:$0xff] %vm877, %v759
    %887 = vst.msk [vmem:[%s6 + $0x48] sm:$0xff] %vm877, %v764
    %888 = vst.msk [vmem:[%s6 + $0x50] sm:$0xff] %vm877, %v769
    %889 = vst.msk [vmem:[%s6 + $0x58] sm:$0xff] %vm877, %v774
    %890 = vst.msk [vmem:[%s6 + $0x60] sm:$0xff] %vm877, %v779
    %891 = vst.msk [vmem:[%s6 + $0x68] sm:$0xff] %vm877, %v784
    %892 = vst.msk [vmem:[%s6 + $0x70] sm:$0xff] %vm877, %v789
    %893 = vst.msk [vmem:[%s6 + $0x78] sm:$0xff] %vm877, %v794
    %894 = vst.msk [vmem:[%s6 + $0x80] sm:$0xff] %vm877, %v799
    %895 = vst.msk [vmem:[%s6 + $0x88] sm:$0xff] %vm877, %v804
    %896 = vst.msk [vmem:[%s6 + $0x90] sm:$0xff] %vm877, %v809
    %897 = vst.msk [vmem:[%s6 + $0x98] sm:$0xff] %vm877, %v814
    %898 = vst.msk [vmem:[%s6 + $0xa0] sm:$0xff] %vm877, %v819
    %899 = vst.msk [vmem:[%s6 + $0xa8] sm:$0xff] %vm877, %v824
    %900 = vst.msk [vmem:[%s6 + $0xb0] sm:$0xff] %vm877, %v829
    %901 = vst.msk [vmem:[%s6 + $0xb8] sm:$0xff] %vm877, %v834
    %902 = vst.msk [vmem:[%s6 + $0xc0] sm:$0xff] %vm877, %v839
    %903 = vst.msk [vmem:[%s6 + $0xc8] sm:$0xff] %vm877, %v844
    %904 = vst.msk [vmem:[%s6 + $0xd0] sm:$0xff] %vm877, %v849
    %905 = vst.msk [vmem:[%s6 + $0xd8] sm:$0xff] %vm877, %v854
    %906 = vst.msk [vmem:[%s6 + $0xe0] sm:$0xff] %vm877, %v859
    %907 = vst.msk [vmem:[%s6 + $0xe8] sm:$0xff] %vm877, %v864
    %908 = vst.msk [vmem:[%s6 + $0xf0] sm:$0xff] %vm877, %v869
    %909 = vst.msk [vmem:[%s6 + $0xf8] sm:$0xff] %vm877, %v874
    // Predicated region
    $region30: #{tpu_custom_call.1} parent=1 // pred_check
      _
    $region31: #{tpu_custom_call.1} parent=1 // pred_check_branch
      %911 = sbr.rel (0) target = $region33
    $region32: #{tpu_custom_call.1} parent=1 // pred_region
      %s913 = ssub.s32 4096, 4096
      %914 = vsyncadd [#allocation4], %s913
      %s915 = sshll.u32 [#allocation7], 4
      %s916 = int_to_ptr.vmem [resolvable:$true] %s915
      %921 = dma.vmem_to_hbm [thread:$0]  %s916, 4096, %s5, [#allocation4], 128, 128, 8
    $region33: #{tpu_custom_call.1} parent=1 // pred_fallthru
      _
    // Predicated region
    $region34: #{tpu_custom_call.1} parent=1 // pred_check
      _
    $region35: #{tpu_custom_call.1} parent=1 // pred_check_branch
      %923 = sbr.rel (0) target = $region37
    $region36: #{tpu_custom_call.1} parent=1 // pred_region
      _
    $region37: #{tpu_custom_call.1} parent=1 // pred_fallthru
      _
    // Predicated region
    $region38: #{tpu_custom_call.1} parent=1 // pred_check
      _
    $region39: #{tpu_custom_call.1} parent=1 // pred_check_branch
      %925 = sbr.rel (0) target = $region41
    $region40: #{tpu_custom_call.1} parent=1 // pred_region
      %926 = dma.done [#allocation4], 4096
    $region41: #{tpu_custom_call.1} parent=1 // pred_fallthru
      _
    // Predicated region
    $region42: #{tpu_custom_call.1} parent=1 // pred_check
      _
    $region43: #{tpu_custom_call.1} parent=1 // pred_check_branch
      %928 = sbr.rel (0) target = $region45
    $region44: #{tpu_custom_call.1} parent=1 // pred_region
      _
    $region45: #{tpu_custom_call.1} parent=1 // pred_fallthru
      _
    %929 = vsyncpa [#allocation3], 1
    %930 = vsyncpa [#allocation6], 1
    %931 = vsyncpa [#allocation4], 1

</llo_original>
